<compile_context>
chip_gen: v7x
topology: tpu7x:2x2x1
jax: 0.10.0
libtpu: 0.0.40
codegen_flags: <defaults>
</compile_context>

<pallas_src>
import functools

import jax
import jax.numpy as jnp
from jax.experimental import pallas as pl
from jax.experimental.pallas import tpu as pltpu


def _round_up(x, m):
    return (x + m - 1) // m * m


def _round_down(x, m):
    return x // m * m


# Conservative, portable VMEM sizing (v5e/v6e: 128 MiB physical; v7x: 64 MiB per core).
_PIPELINE_VMEM_BUDGET = 28 * 1024 * 1024   # target for pipeline buffers + f32 temps
_VMEM_LIMIT_BYTES = 48 * 1024 * 1024       # explicit scoped-VMEM limit (> v5e 16 MiB default)
_TARGET_STEP_BYTES = 2 * 1024 * 1024       # amortize ~0.35 us per-grid-step overhead
_MAX_BN = 16                               # bound the static unroll over the batch block


def _make_kernel(bn, norm):
    """Kernel over an x block (BN, C, T), weight (O, C), out block (BN, O, T)."""
    if norm:
        def kernel(x_ref, w_ref, o_ref):
            w = w_ref[...]
            # BN is small & static -> unrolled; each iteration is a clean
            # (O, C) @ (C, T) MXU matmul with f32 accumulation (no batch transposes).
            for b in range(bn):
                x = x_ref[b]                                                # (C, T)
                raw = jnp.dot(w, x, preferred_element_type=jnp.float32)     # (O, T) f32
                # Norm accumulates in f32 (astype is a no-op for f32 inputs; the
                # potential bf16->f32 temp is accounted for in the VMEM budget).
                # TODO(synk): for very large C with bf16 activations, chunk the
                # sum-of-squares over C to avoid materializing the full f32 copy.
                xf = x.astype(jnp.float32)
                # No epsilon: zero channel vector -> NaN, matching torch semantics.
                inv = jax.lax.rsqrt(jnp.sum(xf * xf, axis=0, keepdims=True))  # (1, T) EUP
                # Fold per-pixel scale after the matmul: W @ (x*inv) == (W@x) * inv.
                o_ref[b] = (raw * inv).astype(o_ref.dtype)                  # lane-dense store
    else:
        def kernel(x_ref, w_ref, o_ref):
            w = w_ref[...]
            for b in range(bn):
                o_ref[b] = jnp.dot(
                    w, x_ref[b], preferred_element_type=jnp.float32
                ).astype(o_ref.dtype)
    return kernel


def conv1o1_forward(x_nchw, weight_oc11, norm=True, weight_dtype=None):
    """x_nchw: (N, C, H, W); weight_oc11: (O, C, 1, 1). Returns (N, O, H, W).

    weight_dtype: dtype the weight is cast to before the MXU. Defaults to the activation
    dtype (for bf16 activations this quantizes fp32 weights to bf16; pass jnp.float32 to
    keep full-precision weights at the cost of an in-kernel upcast of x).
    """
    N, C, H, W = x_nchw.shape
    O = weight_oc11.shape[0]
    HW = H * W
    out_dtype = x_nchw.dtype
    if weight_dtype is None:
        weight_dtype = out_dtype

    x_isz = jnp.dtype(out_dtype).itemsize
    w_isz = jnp.dtype(weight_dtype).itemsize

    # --- VMEM-budget-driven tile selection -------------------------------------------
    # Bytes per (batch-element x pixel) column per grid step:
    #   double-buffered x block + double-buffered out block
    #   + f32 matmul result temp + (worst case) f32 copy of x for the norm.
    per_pixel = 2 * C * x_isz + 2 * O * x_isz + 4 * O + (4 * C if norm else 0)
    weight_bytes = 2 * O * C * w_isz          # double-buffered resident weight
    pixel_budget = max(128, (_PIPELINE_VMEM_BUDGET - weight_bytes) // per_pixel)

    if HW <= 128:
        tile_hw = HW                          # full dim satisfies the BlockSpec rule
    else:
        tile_hw = min(_round_up(HW, 128), max(128, _round_down(pixel_budget, 128)))

    # Batch-block small images so each step moves enough bytes to amortize overhead.
    per_batch_step_bytes = (C + O) * tile_hw * x_isz
    bn_budget = max(1, pixel_budget // tile_hw)
    bn_target = max(1, -(-_TARGET_STEP_BYTES // per_batch_step_bytes))
    BN = max(1, min(N, _MAX_BN, bn_budget, bn_target))

    # Guarantee >= 2 grid steps so both v7x TensorCores get work (negligible extra
    # overhead on single-core v5e/v6e).
    gb = pl.cdiv(N, BN)
    gj = pl.cdiv(HW, tile_hw)
    if gb * gj == 1:
        if HW > 128:
            tile_hw = _round_up(pl.cdiv(HW, 2), 128)
            gj = pl.cdiv(HW, tile_hw)
        elif N > 1:
            BN = pl.cdiv(N, 2)
            gb = pl.cdiv(N, BN)
    grid = (gb, gj)

    # --- Launch -------------------------------------------------------------------------
    x_mat = x_nchw.reshape(N, C, HW)                       # free view (NCHW contiguous)
    w_mat = weight_oc11.reshape(O, C).astype(weight_dtype)

    kernel = _make_kernel(BN, norm)

    cost = pl.CostEstimate(
        flops=int(2 * N * HW * C * O + (3 * N * HW * C if norm else 0)),
        transcendentals=int(N * HW if norm else 0),
        bytes_accessed=int(N * C * HW * x_isz + O * C * w_isz + N * O * HW * x_isz),
    )

    out = pl.pallas_call(
        kernel,
        out_shape=jax.ShapeDtypeStruct((N, O, HW), out_dtype),
        grid_spec=pltpu.PrefetchScalarGridSpec(
            num_scalar_prefetch=0,
            grid=grid,
            in_specs=[
                pl.BlockSpec((BN, C, tile_hw), lambda b, j: (b, 0, j)),  # pixel slab
                pl.BlockSpec((O, C), lambda b, j: (0, 0)),               # resident weight
            ],
            out_specs=pl.BlockSpec((BN, O, tile_hw), lambda b, j: (b, 0, j)),
        ),
        compiler_params=pltpu.CompilerParams(
            dimension_semantics=("parallel", "parallel"),
            vmem_limit_bytes=_VMEM_LIMIT_BYTES,
        ),
        cost_estimate=cost,
    )(x_mat, w_mat)

    return out.reshape(N, O, H, W)


if __name__ == "__main__":
    key = jax.random.PRNGKey(0)
    kx, kw = jax.random.split(key)

    N, C, H, W, O = 2, 4, 16, 16, 8
    x = jax.random.normal(kx, (N, C, H, W), dtype=jnp.float32)
    # Deterministic synthetic weights, shape (O, C, 1, 1) as in the nn.Parameter.
    weight = jax.random.normal(kw, (O, C, 1, 1), dtype=jnp.float32)

    fwd = jax.jit(functools.partial(conv1o1_forward, norm=True))
    y = jax.block_until_ready(fwd(x, weight))

    # Pure-JAX reference check (same math as the PyTorch forward).
    nrm = jnp.linalg.norm(x, axis=1, keepdims=True)
    xn = x / nrm
    y_ref = jnp.einsum("nchw,oc->nohw", xn, weight.reshape(O, C))
    assert y.shape == (N, O, H, W)
    assert jnp.allclose(y, y_ref, atol=1e-5, rtol=1e-5)

    # norm=False path (plain 1x1 conv) check as well.
    y2 = jax.block_until_ready(conv1o1_forward(x, weight, norm=False))
    y2_ref = jnp.einsum("nchw,oc->nohw", x, weight.reshape(O, C))
    assert jnp.allclose(y2, y2_ref, atol=1e-5, rtol=1e-5)

    print("KERNEL_OK")
</pallas_src>

<mosaic_0001>
module attributes {stable_mosaic.version = 11 : i64} {
  func.func @kernel(%arg0: i32, %arg1: i32, %arg2: memref<2x4x128xf32, #tpu.memory_space<vmem>>, %arg3: memref<8x4xf32, #tpu.memory_space<vmem>>, %arg4: memref<2x8x128xf32, #tpu.memory_space<vmem>>) attributes {dimension_semantics = [#tpu.dimension_semantics<parallel>, #tpu.dimension_semantics<parallel>], iteration_bounds = array<i64: 1, 2>, scalar_prefetch = 0 : i64, scratch_operands = 0 : i64, tpu.core_type = #tpu.core_type<tc>, window_params = [{transform_indices = @transform_0, window_bounds = array<i64: 2, 4, 128>}, {pipeline_mode = #tpu.pipeline_mode<synchronous>, transform_indices = @transform_1, window_bounds = array<i64: 8, 4>}, {transform_indices = @transform_2, window_bounds = array<i64: 2, 8, 128>}]} {
    %c0 = arith.constant 0 : index
    %c0_0 = arith.constant 0 : index
    %0 = vector.load %arg3[%c0, %c0_0] : memref<8x4xf32, #tpu.memory_space<vmem>>, vector<8x4xf32>
    %c0_1 = arith.constant 0 : index
    %c0_2 = arith.constant 0 : index
    %c0_3 = arith.constant 0 : index
    %1 = vector.load %arg2[%c0_1, %c0_2, %c0_3] : memref<2x4x128xf32, #tpu.memory_space<vmem>>, vector<1x4x128xf32>
    %2 = vector.shape_cast %1 : vector<1x4x128xf32> to vector<4x128xf32>
    %cst = arith.constant dense<0.000000e+00> : vector<8x128xf32>
    %3 = tpu.matmul %0, %2, %cst {dimension_numbers = #tpu.dot_dimension_numbers<[1], [0], [0], [1], [0, 0, 1, 1], [], []>} : vector<8x4xf32>, vector<4x128xf32>, vector<8x128xf32> -> vector<8x128xf32>
    %4 = arith.mulf %2, %2 : vector<4x128xf32>
    %cst_4 = arith.constant dense<0.000000e+00> : vector<128xf32>
    %5 = vector.multi_reduction <add>, %4, %cst_4 [0] : vector<4x128xf32> to vector<128xf32>
    %6 = vector.shape_cast %5 : vector<128xf32> to vector<1x128xf32>
    %7 = math.rsqrt %6 : vector<1x128xf32>
    %8 = vector.broadcast %7 : vector<1x128xf32> to vector<8x128xf32>
    %9 = arith.mulf %3, %8 : vector<8x128xf32>
    %c0_5 = arith.constant 0 : index
    %c0_6 = arith.constant 0 : index
    %c0_7 = arith.constant 0 : index
    %10 = vector.load %arg4[%c0_5, %c0_6, %c0_7] : memref<2x8x128xf32, #tpu.memory_space<vmem>>, vector<1x8x128xf32>
    %11 = vector.shape_cast %10 : vector<1x8x128xf32> to vector<8x128xf32>
    %12 = vector.shape_cast %9 : vector<8x128xf32> to vector<1x8x128xf32>
    tpu.vector_store %arg4[%c0_5, %c0_6, %c0_7], %12 {strides = array<i32>} : memref<2x8x128xf32, #tpu.memory_space<vmem>>, vector<1x8x128xf32>,
    %c1 = arith.constant 1 : index
    %c0_8 = arith.constant 0 : index
    %c0_9 = arith.constant 0 : index
    %13 = vector.load %arg2[%c1, %c0_8, %c0_9] : memref<2x4x128xf32, #tpu.memory_space<vmem>>, vector<1x4x128xf32>
    %14 = vector.shape_cast %13 : vector<1x4x128xf32> to vector<4x128xf32>
    %cst_10 = arith.constant dense<0.000000e+00> : vector<8x128xf32>
    %15 = tpu.matmul %0, %14, %cst_10 {dimension_numbers = #tpu.dot_dimension_numbers<[1], [0], [0], [1], [0, 0, 1, 1], [], []>} : vector<8x4xf32>, vector<4x128xf32>, vector<8x128xf32> -> vector<8x128xf32>
    %16 = arith.mulf %14, %14 : vector<4x128xf32>
    %cst_11 = arith.constant dense<0.000000e+00> : vector<128xf32>
    %17 = vector.multi_reduction <add>, %16, %cst_11 [0] : vector<4x128xf32> to vector<128xf32>
    %18 = vector.shape_cast %17 : vector<128xf32> to vector<1x128xf32>
    %19 = math.rsqrt %18 : vector<1x128xf32>
    %20 = vector.broadcast %19 : vector<1x128xf32> to vector<8x128xf32>
    %21 = arith.mulf %15, %20 : vector<8x128xf32>
    %c1_12 = arith.constant 1 : index
    %c0_13 = arith.constant 0 : index
    %c0_14 = arith.constant 0 : index
    %22 = vector.load %arg4[%c1_12, %c0_13, %c0_14] : memref<2x8x128xf32, #tpu.memory_space<vmem>>, vector<1x8x128xf32>
    %23 = vector.shape_cast %22 : vector<1x8x128xf32> to vector<8x128xf32>
    %24 = vector.shape_cast %21 : vector<8x128xf32> to vector<1x8x128xf32>
    tpu.vector_store %arg4[%c1_12, %c0_13, %c0_14], %24 {strides = array<i32>} : memref<2x8x128xf32, #tpu.memory_space<vmem>>, vector<1x8x128xf32>,
    return
  }
  func.func @transform_0(%arg0: i32, %arg1: i32) -> (i32, i32, i32) {
    %c0_i32 = arith.constant 0 : i32
    %c0_i32_0 = arith.constant 0 : i32
    return %arg0, %c0_i32, %arg1 : i32, i32, i32
  }
  func.func @transform_1(%arg0: i32, %arg1: i32) -> (i32, i32) {
    %c0_i32 = arith.constant 0 : i32
    %c0_i32_0 = arith.constant 0 : i32
    %c0_i32_1 = arith.constant 0 : i32
    return %c0_i32, %c0_i32_0 : i32, i32
  }
  func.func @transform_2(%arg0: i32, %arg1: i32) -> (i32, i32, i32) {
    %c0_i32 = arith.constant 0 : i32
    %c0_i32_0 = arith.constant 0 : i32
    return %arg0, %c0_i32, %arg1 : i32, i32, i32
  }
}

</mosaic_0001>

<llo_original>
// kernel: conv1o1_forward.1
$region0: #{conv1o1_forward.1}
  #allocation0 [shape = 'u32[]', space=smem, size = 0x4, offset = 0x4, fixed_abs, tag = 'smem constant byte address 0x4 - core index']
  #allocation1 [shape = 'u32[144,128]{1,0:T(1,128)}', space=vmem, size = 0x12000, scoped, tag = 'internal scratch']
  %s0 = inlined_call_operand.vmem [shape: f32[2,4,256], index: 0, kind: input, shape index: {}]
  %s1 = inlined_call_operand.vmem [shape: f32[8,4], index: 1, kind: input, shape index: {}]
  %s2 = inlined_call_operand.vmem [shape: f32[2,8,256], index: 2, kind: output, shape index: {}]
  %s3 = sld [smem:[#allocation0]]
  $region116: #{conv1o1_forward.1} parent=0
    _
  %s5 = ssub.s32 1, %s3
  %s6 = scalar_select 0, %s5, %s3
  $region1: #{conv1o1_forward.1} parent=0
    #allocation2 [shape = 'u8[8192]{0}', space=vmem, size = 0x2000, scoped, tag = 'input window, operand 0']
    #allocation3 [shape = 'u8[16384]{0}', space=vmem, size = 0x4000, scoped, tag = 'output window, operand 0']
    loop: start=0, step=1, limit=4
    $region2: #{conv1o1_forward.1} parent=1 // loop_pre_header
      _
    $region3: #{conv1o1_forward.1} parent=1 // loop_header
      %s8 = sphi 0, %s12
      %p9 = scmp.ge.s32.totalorder %s8, 4
      %s15 = sphi 0, %s27
      %s16 = sphi 0, %s23
      %s17 = sphi 0, %s15
      %s18 = sphi 0, %s16
      %s19 = sphi 0, %s17
      %s20 = sphi 0, %s18
      %s32 = sphi 0, %s34
      %s35 = sphi 0, %s32
      %s36 = sphi 0, %s35
      %s52 = sphi 0, %s36
      %s56 = sphi 0, %s56
      %s58 = sphi 0, %s56
      %s59 = sphi 0, %s58
      %s73 = sphi 0, %s59
      %s81 = sphi 0, %s83
      %s84 = sphi 0, %s81
      %s85 = sphi 0, %s84
      %s101 = sphi 0, %s85
    $region4: #{conv1o1_forward.1} parent=1 // loop_header_branch
      %11 = sbr.rel (%p9) target = $region8
    $region5: #{conv1o1_forward.1} parent=1 // loop_body
      %s13 = ssub.s32 %s8, 1
      %s14 = ssub.s32 %s8, 2
      %s21 = sadd.s32 1, %s16
      %p22 = scmp.ge.s32.totalorder %s21, 2
      %s23 = scalar_select %p22, 0, %s21
      %s24 = sadd.s32 1, %s15
      %s25 = scalar_select %p22, %s24, %s15
      %p26 = scmp.ge.s32.totalorder %s25, 1
      %s27 = scalar_select %p26, 0, %s25
      %s28 = ssub.s32 %s15, %s27
      %s29 = ssub.s32 %s16, %s23
      %s30 = sor.u32 %s28, %s29
      %p31 = scmp.eq.s32.totalorder %s30, 0
      %s33 = sadd.s32 %s32, 1
      %s34 = scalar_select %p31, %s32, %s33
      %p37 = pneg %p31
      %p38 = scmp.eq.s32.totalorder %s8, 1
      %p39 = por %p37, %p38
      %p40 = scmp.ne.s32.totalorder %s32, %s35
      %p41 = scmp.eq.s32.totalorder %s8, 0
      %p42 = por %p40, %p41
      %p43 = scmp.ne.s32.totalorder %s32, %s35
      %p44 = scmp.eq.s32.totalorder %s13, 1
      %p45 = por %p43, %p44
      %p46 = scmp.ne.s32.totalorder %s35, %s36
      %p47 = scmp.eq.s32.totalorder %s13, 0
      %p48 = por %p46, %p47
      %p49 = scmp.ne.s32.totalorder %s35, %s36
      %p50 = scmp.eq.s32.totalorder %s14, 1
      %p51 = por %p49, %p50
      %p53 = scmp.ne.s32.totalorder %s36, %s52
      %p54 = scmp.eq.s32.totalorder %s14, 0
      %p55 = por %p53, %p54
      %s57 = sadd.s32 %s56, 1
      %p60 = scmp.eq.s32.totalorder %s8, 1
      %p61 = scmp.ne.s32.totalorder %s56, %s58
      %p62 = scmp.eq.s32.totalorder %s8, 0
      %p63 = por %p61, %p62
      %p64 = scmp.ne.s32.totalorder %s56, %s58
      %p65 = scmp.eq.s32.totalorder %s13, 1
      %p66 = por %p64, %p65
      %p67 = scmp.ne.s32.totalorder %s58, %s59
      %p68 = scmp.eq.s32.totalorder %s13, 0
      %p69 = por %p67, %p68
      %p70 = scmp.ne.s32.totalorder %s58, %s59
      %p71 = scmp.eq.s32.totalorder %s14, 1
      %p72 = por %p70, %p71
      %p74 = scmp.ne.s32.totalorder %s59, %s73
      %p75 = scmp.eq.s32.totalorder %s14, 0
      %p76 = por %p74, %p75
      %s77 = ssub.s32 %s15, %s27
      %s78 = ssub.s32 %s16, %s23
      %s79 = sor.u32 %s77, %s78
      %p80 = scmp.eq.s32.totalorder %s79, 0
      %s82 = sadd.s32 %s81, 1
      %s83 = scalar_select %p80, %s81, %s82
      %p86 = pneg %p80
      %p87 = scmp.eq.s32.totalorder %s8, 1
      %p88 = por %p86, %p87
      %p89 = scmp.ne.s32.totalorder %s81, %s84
      %p90 = scmp.eq.s32.totalorder %s8, 0
      %p91 = por %p89, %p90
      %p92 = scmp.ne.s32.totalorder %s81, %s84
      %p93 = scmp.eq.s32.totalorder %s13, 1
      %p94 = por %p92, %p93
      %p95 = scmp.ne.s32.totalorder %s84, %s85
      %p96 = scmp.eq.s32.totalorder %s13, 0
      %p97 = por %p95, %p96
      %p98 = scmp.ne.s32.totalorder %s84, %s85
      %p99 = scmp.eq.s32.totalorder %s14, 1
      %p100 = por %p98, %p99
      %p102 = scmp.ne.s32.totalorder %s85, %s101
      %p103 = scmp.eq.s32.totalorder %s14, 0
      %p104 = por %p102, %p103
      %p105 = scmp.le.s32.totalorder 1, %s8
      %p106 = scmp.lt.s32.totalorder %s8, 3
      %p107 = pnand %p105, %p106
      %p108 = pneg %p107
      // Predicated region
      $region9: #{conv1o1_forward.1} parent=5 // pred_check
        _
      $region10: #{conv1o1_forward.1} parent=5 // pred_check_branch
        %110 = sbr.rel (%p107) target = $region12
      $region11: #{conv1o1_forward.1} parent=5 // pred_region
        %s111 = ssub.s32 %s8, 1
        // Predicated region
        $region13: #{conv1o1_forward.1} parent=11 // pred_check
          %p112 = pneg %p69
        $region14: #{conv1o1_forward.1} parent=11 // pred_check_branch
          %114 = sbr.rel (%p112) target = $region16
        $region15: #{conv1o1_forward.1} parent=11 // pred_region
          _
        $region16: #{conv1o1_forward.1} parent=11 // pred_fallthru
          _
      $region12: #{conv1o1_forward.1} parent=5 // pred_fallthru
        _
      %p115 = scmp.lt.s32.totalorder %s8, 2
      // Predicated region
      $region17: #{conv1o1_forward.1} parent=5 // pred_check
        %p116 = pneg %p115
      $region18: #{conv1o1_forward.1} parent=5 // pred_check_branch
        %118 = sbr.rel (%p116) target = $region20
      $region19: #{conv1o1_forward.1} parent=5 // pred_region
        // Predicated region
        $region21: #{conv1o1_forward.1} parent=19 // pred_check
          %p119 = pneg %p42
        $region22: #{conv1o1_forward.1} parent=19 // pred_check_branch
          %121 = sbr.rel (%p119) target = $region24
        $region23: #{conv1o1_forward.1} parent=19 // pred_region
          %s122 = sand.u32 %s32, 1
          %s123 = sand.u32 %s32, 1
          %s124 = smul.addr %s123, 8
          %s125 = scalar_lea.vmem [#allocation2], %s124
          %s126 = smul.u32 2, %s15
          %s127 = smul.addr %s126, 2
          %s128 = sadd.s32 %s16, %s127
          %s129 = smul.addr %s128, 4
          %s130 = scalar_lea.vmem %s0, %s129
          // Predicated region
          $region25: #{conv1o1_forward.1} parent=23 // pred_check
            _
          $region26: #{conv1o1_forward.1} parent=23 // pred_check_branch
            %132 = sbr.rel (0) target = $region28
          $region27: #{conv1o1_forward.1} parent=23 // pred_region
            // Predicated region
            $region29: #{conv1o1_forward.1} parent=27 // pred_check
              _
            $region30: #{conv1o1_forward.1} parent=27 // pred_check_branch
              %134 = sbr.rel target = $region32
            $region31: #{conv1o1_forward.1} parent=27 // pred_region
              // Predicated region
              $region44: #{conv1o1_forward.1} parent=31 // pred_check
                _
              $region45: #{conv1o1_forward.1} parent=31 // pred_check_branch
                %151 = sbr.rel (0) target = $region47
              $region46: #{conv1o1_forward.1} parent=31 // pred_region
                loop: start=0, step=1, limit=1
                $region48: #{conv1o1_forward.1} parent=46 // loop_pre_header
                  _
                $region49: #{conv1o1_forward.1} parent=46 // loop_header
                  %s153 = sphi 0, %s157
                  %p154 = scmp.ge.s32.totalorder %s153, 1
                  %s158 = sphi %s130, %s130
                  %s159 = sphi %s125, %s125
                $region50: #{conv1o1_forward.1} parent=46 // loop_header_branch
                  %156 = sbr.rel (%p154) target = $region54
                $region51: #{conv1o1_forward.1} parent=46 // loop_body
                  _
                $region52: #{conv1o1_forward.1} parent=46 // loop_footer
                  %s157 = sadd.s32 1, %s153
                $region53: #{conv1o1_forward.1} parent=46 // loop_footer_branch
                  %152 = sbr.rel target = $region49
                $region54: #{conv1o1_forward.1} parent=46 // loop_exit
                  _
                loop: start=0, step=1, limit=1
                $region55: #{conv1o1_forward.1} parent=46 // loop_pre_header
                  _
                $region56: #{conv1o1_forward.1} parent=46 // loop_header
                  %s162 = sphi 0, %s166
                  %p163 = scmp.ge.s32.totalorder %s162, 1
                  %s167 = sphi %s130, %s130
                  %s168 = sphi %s125, %s125
                $region57: #{conv1o1_forward.1} parent=46 // loop_header_branch
                  %165 = sbr.rel (%p163) target = $region61
                $region58: #{conv1o1_forward.1} parent=46 // loop_body
                  %v169 = vld [vmem:[%s167] sm:$0xf]
                  %170 = vst [vmem:[%s168] sm:$0xf] %v169
                  %v171 = vld [vmem:[%s167 + $0x8] sm:$0xf]
                  %172 = vst [vmem:[%s168 + $0x4] sm:$0xf] %v171
                $region59: #{conv1o1_forward.1} parent=46 // loop_footer
                  %s166 = sadd.s32 1, %s162
                $region60: #{conv1o1_forward.1} parent=46 // loop_footer_branch
                  %161 = sbr.rel target = $region56
                $region61: #{conv1o1_forward.1} parent=46 // loop_exit
                  _
              $region47: #{conv1o1_forward.1} parent=31 // pred_fallthru
                _
            $region32: #{conv1o1_forward.1} parent=27 // pred_fallthru
              _
            // Predicated region
            $region33: #{conv1o1_forward.1} parent=27 // pred_check
              _
            $region34: #{conv1o1_forward.1} parent=27 // pred_check_branch
              %136 = sbr.rel (0) target = $region36
            $region35: #{conv1o1_forward.1} parent=27 // pred_region
              loop: start=0, step=1, limit=1
              $region37: #{conv1o1_forward.1} parent=35 // loop_pre_header
                _
              $region38: #{conv1o1_forward.1} parent=35 // loop_header
                %s139 = sphi 0, %s143
                %p140 = scmp.ge.s32.totalorder %s139, 1
                %s144 = sphi %s130, %s130
                %s145 = sphi %s125, %s125
              $region39: #{conv1o1_forward.1} parent=35 // loop_header_branch
                %142 = sbr.rel (%p140) target = $region43
              $region40: #{conv1o1_forward.1} parent=35 // loop_body
                %v146 = vld [vmem:[%s144] sm:$0xf]
                %147 = vst [vmem:[%s145] sm:$0xf] %v146
                %v148 = vld [vmem:[%s144 + $0x8] sm:$0xf]
                %149 = vst [vmem:[%s145 + $0x4] sm:$0xf] %v148
              $region41: #{conv1o1_forward.1} parent=35 // loop_footer
                %s143 = sadd.s32 1, %s139
              $region42: #{conv1o1_forward.1} parent=35 // loop_footer_branch
                %138 = sbr.rel target = $region38
              $region43: #{conv1o1_forward.1} parent=35 // loop_exit
                _
            $region36: #{conv1o1_forward.1} parent=27 // pred_fallthru
              _
          $region28: #{conv1o1_forward.1} parent=23 // pred_fallthru
            _
          %173 = vnop
        $region24: #{conv1o1_forward.1} parent=19 // pred_fallthru
          _
      $region20: #{conv1o1_forward.1} parent=5 // pred_fallthru
        _
      %p174 = scmp.le.s32.totalorder 1, %s8
      %p175 = scmp.lt.s32.totalorder %s8, 3
      %p176 = pnand %p174, %p175
      %p177 = pneg %p176
      // Predicated region
      $region62: #{conv1o1_forward.1} parent=5 // pred_check
        _
      $region63: #{conv1o1_forward.1} parent=5 // pred_check_branch
        %179 = sbr.rel (%p176) target = $region65
      $region64: #{conv1o1_forward.1} parent=5 // pred_region
        %s180 = ssub.s32 %s8, 1
        %s181 = sand.u32 %s35, 1
        %s182 = sand.u32 %s35, 1
        %s183 = smul.addr %s182, 8
        %s184 = scalar_lea.vmem [#allocation2], %s183
        // Predicated region
        $region66: #{conv1o1_forward.1} parent=64 // pred_check
          %p185 = pneg %p48
        $region67: #{conv1o1_forward.1} parent=64 // pred_check_branch
          %187 = sbr.rel (%p185) target = $region69
        $region68: #{conv1o1_forward.1} parent=64 // pred_region
          _
        $region69: #{conv1o1_forward.1} parent=64 // pred_fallthru
          _
        %s188 = sand.u32 %s35, 1
        %s189 = sand.u32 %s35, 1
        %s190 = smul.addr %s189, 8
        %s191 = scalar_lea.vmem [#allocation2], %s190
        %p192 = pneg %p48
        %p193 = pneg %p45
        %p194 = pneg %p69
        %p195 = pneg %p66
        %p196 = pneg %p97
        %p197 = pneg %p94
        %s198 = sand.u32 %s84, 1
        %s199 = sand.u32 %s84, 1
        %s200 = smul.addr %s199, 16
        %s201 = scalar_lea.vmem [#allocation3], %s200
        %s202 = smul.u32 2, %s17
        %s203 = smul.u32 2, %s17
        %v204 = vld [vmem:[%s1] sm:$0xff]
        %v205 = vld [vmem:[%s184] sm:$0xf]
        %vm206 = vcmask 31744
        %v208 = vsel %vm206, %v204, 0
        %vm210 = vcmask 1043456
        %v212 = vsel %vm210, %v205, 0
        %214 = vmatprep.subr.mxu0 0.0
        %215 = vmatpush1.msra.mxu0 %v212
        %216 = vmatprep.subr.mxu0 0.0
        %217 = vmatpush1.msra.mxu0 0.0
        %218 = vmatprep.subr.mxu0 0.0
        %219 = vmatpush1.msra.mxu0 0.0
        %220 = vmatprep.subr.mxu0 0.0
        %221 = vmatpush1.msra.mxu0 0.0
        %222 = vmatprep.subr.mxu0 0.0
        %223 = vmatpush1.msra.mxu0 0.0
        %224 = vmatprep.subr.mxu0 0.0
        %225 = vmatpush1.msra.mxu0 0.0
        %226 = vmatprep.subr.mxu0 0.0
        %227 = vmatpush1.msra.mxu0 0.0
        %228 = vmatprep.subr.mxu0 0.0
        %229 = vmatpush1.msra.mxu0 0.0
        %230 = vmatprep.subr.mxu0 0.0
        %231 = vmatpush1.msra.mxu0 0.0
        %232 = vmatprep.subr.mxu0 0.0
        %233 = vmatpush1.msra.mxu0 0.0
        %234 = vmatprep.subr.mxu0 0.0
        %235 = vmatpush1.msra.mxu0 0.0
        %236 = vmatprep.subr.mxu0 0.0
        %237 = vmatpush1.msra.mxu0 0.0
        %238 = vmatprep.subr.mxu0 0.0
        %239 = vmatpush1.msra.mxu0 0.0
        %240 = vmatprep.subr.mxu0 0.0
        %241 = vmatpush1.msra.mxu0 0.0
        %242 = vmatprep.subr.mxu0 0.0
        %243 = vmatpush1.msra.mxu0 0.0
        %244 = vmatprep.subr.mxu0 0.0
        %245 = vmatpush1.msra.mxu0 0.0
        %246 = vmatprep.subr.mxu0 0.0
        %247 = vmatpush1.msra.mxu0 0.0
        %248 = vmatprep.subr.mxu0 0.0
        %249 = vmatpush1.msra.mxu0 0.0
        %250 = vmatprep.subr.mxu0 0.0
        %251 = vmatpush1.msra.mxu0 0.0
        %252 = vmatprep.subr.mxu0 0.0
        %253 = vmatpush1.msra.mxu0 0.0
        %254 = vmatprep.subr.mxu0 0.0
        %255 = vmatpush1.msra.mxu0 0.0
        %256 = vmatprep.subr.mxu0 0.0
        %257 = vmatpush1.msra.mxu0 0.0
        %258 = vmatprep.subr.mxu0 0.0
        %259 = vmatpush1.msra.mxu0 0.0
        %260 = vmatprep.subr.mxu0 0.0
        %261 = vmatpush1.msra.mxu0 0.0
        %262 = vmatprep.subr.mxu0 0.0
        %263 = vmatpush1.msra.mxu0 0.0
        %264 = vmatprep.subr.mxu0 0.0
        %265 = vmatpush1.msra.mxu0 0.0
        %266 = vmatprep.subr.mxu0 0.0
        %267 = vmatpush1.msra.mxu0 0.0
        %268 = vmatprep.subr.mxu0 0.0
        %269 = vmatpush1.msra.mxu0 0.0
        %270 = vmatprep.subr.mxu0 0.0
        %271 = vmatpush1.msra.mxu0 0.0
        %272 = vmatprep.subr.mxu0 0.0
        %273 = vmatpush1.msra.mxu0 0.0
        %274 = vmatprep.subr.mxu0 0.0
        %275 = vmatpush1.msra.mxu0 0.0
        %276 = vmatprep.subr.mxu0 0.0
        %277 = vmatpush1.msra.mxu0 0.0
        %278 = vmatprep.mubr.f32.mxu0 0.0
        %279 = vmatmul.mubr.f32.gmra.mrb[0].mxu0 %v208
        %v280 = vpop.f32.mrb[0].mxu0
        %v281 = vadd.f32 0.0, %v280
        %v282 = vpop.f32.mrb[0].mxu0
        %283 = vdwg.mxu0
        %v284 = vmul.f32 %v205, %v205
        %v285 = vsel %vm210, %v284, 0.0
        %v286 = vrot.slane %v285, 4
        %v287 = vadd.f32 %v285, %v286
        %v288 = vrot.slane %v287, 2
        %v289 = vadd.f32 %v287, %v288
        %v290 = vrot.slane %v289, 1
        %v291 = vadd.f32 %v289, %v290
        %v292 = vrsqrt.pop %v291
        %v293 = vmul.f32 %v281, %v292
        %294 = vst [vmem:[%s201] sm:$0xff] %v293
        %s295 = scalar_lea.vmem %s184, 4 [#allocation2]
        %v296 = vld [vmem:[%s295] sm:$0xf]
        %v298 = vsel %vm210, %v296, 0
        %300 = vmatprep.subr.mxu0 0.0
        %301 = vmatpush1.msra.mxu0 %v298
        %302 = vmatprep.subr.mxu0 0.0
        %303 = vmatpush1.msra.mxu0 0.0
        %304 = vmatprep.subr.mxu0 0.0
        %305 = vmatpush1.msra.mxu0 0.0
        %306 = vmatprep.subr.mxu0 0.0
        %307 = vmatpush1.msra.mxu0 0.0
        %308 = vmatprep.subr.mxu0 0.0
        %309 = vmatpush1.msra.mxu0 0.0
        %310 = vmatprep.subr.mxu0 0.0
        %311 = vmatpush1.msra.mxu0 0.0
        %312 = vmatprep.subr.mxu0 0.0
        %313 = vmatpush1.msra.mxu0 0.0
        %314 = vmatprep.subr.mxu0 0.0
        %315 = vmatpush1.msra.mxu0 0.0
        %316 = vmatprep.subr.mxu0 0.0
        %317 = vmatpush1.msra.mxu0 0.0
        %318 = vmatprep.subr.mxu0 0.0
        %319 = vmatpush1.msra.mxu0 0.0
        %320 = vmatprep.subr.mxu0 0.0
        %321 = vmatpush1.msra.mxu0 0.0
        %322 = vmatprep.subr.mxu0 0.0
        %323 = vmatpush1.msra.mxu0 0.0
        %324 = vmatprep.subr.mxu0 0.0
        %325 = vmatpush1.msra.mxu0 0.0
        %326 = vmatprep.subr.mxu0 0.0
        %327 = vmatpush1.msra.mxu0 0.0
        %328 = vmatprep.subr.mxu0 0.0
        %329 = vmatpush1.msra.mxu0 0.0
        %330 = vmatprep.subr.mxu0 0.0
        %331 = vmatpush1.msra.mxu0 0.0
        %332 = vmatprep.subr.mxu0 0.0
        %333 = vmatpush1.msra.mxu0 0.0
        %334 = vmatprep.subr.mxu0 0.0
        %335 = vmatpush1.msra.mxu0 0.0
        %336 = vmatprep.subr.mxu0 0.0
        %337 = vmatpush1.msra.mxu0 0.0
        %338 = vmatprep.subr.mxu0 0.0
        %339 = vmatpush1.msra.mxu0 0.0
        %340 = vmatprep.subr.mxu0 0.0
        %341 = vmatpush1.msra.mxu0 0.0
        %342 = vmatprep.subr.mxu0 0.0
        %343 = vmatpush1.msra.mxu0 0.0
        %344 = vmatprep.subr.mxu0 0.0
        %345 = vmatpush1.msra.mxu0 0.0
        %346 = vmatprep.subr.mxu0 0.0
        %347 = vmatpush1.msra.mxu0 0.0
        %348 = vmatprep.subr.mxu0 0.0
        %349 = vmatpush1.msra.mxu0 0.0
        %350 = vmatprep.subr.mxu0 0.0
        %351 = vmatpush1.msra.mxu0 0.0
        %352 = vmatprep.subr.mxu0 0.0
        %353 = vmatpush1.msra.mxu0 0.0
        %354 = vmatprep.subr.mxu0 0.0
        %355 = vmatpush1.msra.mxu0 0.0
        %356 = vmatprep.subr.mxu0 0.0
        %357 = vmatpush1.msra.mxu0 0.0
        %358 = vmatprep.subr.mxu0 0.0
        %359 = vmatpush1.msra.mxu0 0.0
        %360 = vmatprep.subr.mxu0 0.0
        %361 = vmatpush1.msra.mxu0 0.0
        %362 = vmatprep.subr.mxu0 0.0
        %363 = vmatpush1.msra.mxu0 0.0
        %364 = vmatprep.mubr.f32.mxu0 0.0
        %365 = vmatmul.mubr.f32.gmra.mrb[0].mxu0 %v208
        %v366 = vpop.f32.mrb[0].mxu0
        %v367 = vadd.f32 0.0, %v366
        %v368 = vpop.f32.mrb[0].mxu0
        %369 = vdwg.mxu0
        %v370 = vmul.f32 %v296, %v296
        %v371 = vsel %vm210, %v370, 0.0
        %v372 = vrot.slane %v371, 4
        %v373 = vadd.f32 %v371, %v372
        %v374 = vrot.slane %v373, 2
        %v375 = vadd.f32 %v373, %v374
        %v376 = vrot.slane %v375, 1
        %v377 = vadd.f32 %v375, %v376
        %v378 = vrsqrt.pop %v377
        %v379 = vmul.f32 %v367, %v378
        %s380 = scalar_lea.vmem %s201, 8 [#allocation3]
        %381 = vst [vmem:[%s380] sm:$0xff] %v379
        %s382 = sand.u32 %s84, 1
        %s383 = sand.u32 %s84, 1
        %s384 = smul.addr %s383, 16
        %s385 = scalar_lea.vmem [#allocation3], %s384
        // Predicated region
        $region70: #{conv1o1_forward.1} parent=64 // pred_check
          %p386 = pneg %p94
        $region71: #{conv1o1_forward.1} parent=64 // pred_check_branch
          %388 = sbr.rel (%p386) target = $region73
        $region72: #{conv1o1_forward.1} parent=64 // pred_region
          %s389 = smul.u32 2, %s17
          %s390 = smul.addr %s389, 2
          %s391 = sadd.s32 %s18, %s390
          %s392 = smul.addr %s391, 8
          %s393 = scalar_lea.vmem %s2, %s392
          // Predicated region
          $region74: #{conv1o1_forward.1} parent=72 // pred_check
            _
          $region75: #{conv1o1_forward.1} parent=72 // pred_check_branch
            %395 = sbr.rel (0) target = $region77
          $region76: #{conv1o1_forward.1} parent=72 // pred_region
            // Predicated region
            $region78: #{conv1o1_forward.1} parent=76 // pred_check
              _
            $region79: #{conv1o1_forward.1} parent=76 // pred_check_branch
              %397 = sbr.rel (0) target = $region81
            $region80: #{conv1o1_forward.1} parent=76 // pred_region
              // Predicated region
              $region93: #{conv1o1_forward.1} parent=80 // pred_check
                _
              $region94: #{conv1o1_forward.1} parent=80 // pred_check_branch
                %414 = sbr.rel (0) target = $region96
              $region95: #{conv1o1_forward.1} parent=80 // pred_region
                loop: start=0, step=1, limit=1
                $region97: #{conv1o1_forward.1} parent=95 // loop_pre_header
                  _
                $region98: #{conv1o1_forward.1} parent=95 // loop_header
                  %s416 = sphi 0, %s420
                  %p417 = scmp.ge.s32.totalorder %s416, 1
                  %s421 = sphi %s385, %s385
                  %s422 = sphi %s393, %s393
                $region99: #{conv1o1_forward.1} parent=95 // loop_header_branch
                  %419 = sbr.rel (%p417) target = $region103
                $region100: #{conv1o1_forward.1} parent=95 // loop_body
                  %v423 = vld [vmem:[%s421] sm:$0xff]
                  %424 = vst [vmem:[%s422] sm:$0xff] %v423
                  %v425 = vld [vmem:[%s421 + $0x8] sm:$0xff]
                  %426 = vst [vmem:[%s422 + $0x10] sm:$0xff] %v425
                $region101: #{conv1o1_forward.1} parent=95 // loop_footer
                  %s420 = sadd.s32 1, %s416
                $region102: #{conv1o1_forward.1} parent=95 // loop_footer_branch
                  %415 = sbr.rel target = $region98
                $region103: #{conv1o1_forward.1} parent=95 // loop_exit
                  _
              $region96: #{conv1o1_forward.1} parent=80 // pred_fallthru
                _
              // Predicated region
              $region104: #{conv1o1_forward.1} parent=80 // pred_check
                _
              $region105: #{conv1o1_forward.1} parent=80 // pred_check_branch
                %428 = sbr.rel target = $region107
              $region106: #{conv1o1_forward.1} parent=80 // pred_region
                _
              $region107: #{conv1o1_forward.1} parent=80 // pred_fallthru
                _
            $region81: #{conv1o1_forward.1} parent=76 // pred_fallthru
              _
            // Predicated region
            $region82: #{conv1o1_forward.1} parent=76 // pred_check
              _
            $region83: #{conv1o1_forward.1} parent=76 // pred_check_branch
              %399 = sbr.rel target = $region85
            $region84: #{conv1o1_forward.1} parent=76 // pred_region
              loop: start=0, step=1, limit=1
              $region86: #{conv1o1_forward.1} parent=84 // loop_pre_header
                _
              $region87: #{conv1o1_forward.1} parent=84 // loop_header
                %s402 = sphi 0, %s406
                %p403 = scmp.ge.s32.totalorder %s402, 1
                %s407 = sphi %s385, %s385
                %s408 = sphi %s393, %s393
              $region88: #{conv1o1_forward.1} parent=84 // loop_header_branch
                %405 = sbr.rel (%p403) target = $region92
              $region89: #{conv1o1_forward.1} parent=84 // loop_body
                %v409 = vld [vmem:[%s407] sm:$0xff]
                %410 = vst [vmem:[%s408] sm:$0xff] %v409
                %v411 = vld [vmem:[%s407 + $0x8] sm:$0xff]
                %412 = vst [vmem:[%s408 + $0x10] sm:$0xff] %v411
              $region90: #{conv1o1_forward.1} parent=84 // loop_footer
                %s406 = sadd.s32 1, %s402
              $region91: #{conv1o1_forward.1} parent=84 // loop_footer_branch
                %401 = sbr.rel target = $region87
              $region92: #{conv1o1_forward.1} parent=84 // loop_exit
                _
            $region85: #{conv1o1_forward.1} parent=76 // pred_fallthru
              _
          $region77: #{conv1o1_forward.1} parent=72 // pred_fallthru
            _
          %429 = vnop
        $region73: #{conv1o1_forward.1} parent=64 // pred_fallthru
          _
      $region65: #{conv1o1_forward.1} parent=5 // pred_fallthru
        _
      %p430 = scmp.le.s32.totalorder 2, %s8
      // Predicated region
      $region108: #{conv1o1_forward.1} parent=5 // pred_check
        %p431 = pneg %p430
      $region109: #{conv1o1_forward.1} parent=5 // pred_check_branch
        %433 = sbr.rel (%p431) target = $region111
      $region110: #{conv1o1_forward.1} parent=5 // pred_region
        %s434 = ssub.s32 %s8, 2
        // Predicated region
        $region112: #{conv1o1_forward.1} parent=110 // pred_check
          %p435 = pneg %p100
        $region113: #{conv1o1_forward.1} parent=110 // pred_check_branch
          %437 = sbr.rel (%p435) target = $region115
        $region114: #{conv1o1_forward.1} parent=110 // pred_region
          %s438 = sand.u32 %s85, 1
          %s439 = sand.u32 %s85, 1
          %s440 = smul.addr %s439, 16
          %s441 = scalar_lea.vmem [#allocation3], %s440
        $region115: #{conv1o1_forward.1} parent=110 // pred_fallthru
          _
      $region111: #{conv1o1_forward.1} parent=5 // pred_fallthru
        _
    $region6: #{conv1o1_forward.1} parent=1 // loop_footer
      %s12 = sadd.s32 1, %s8
    $region7: #{conv1o1_forward.1} parent=1 // loop_footer_branch
      %7 = sbr.rel target = $region3
    $region8: #{conv1o1_forward.1} parent=1 // loop_exit
      _

</llo_original>
